<compile_context>
chip_gen: v7x
topology: tpu7x:2x2x1
jax: 0.10.0
libtpu: 0.0.40
codegen_flags: <defaults>
</compile_context>

<pallas_src>
import jax
import jax.numpy as jnp
from jax.experimental import pallas as pl
from jax.experimental.pallas import tpu as pltpu


def _round_up(a, m):
    return ((a + m - 1) // m) * m


# ---------------------------------------------------------------------------
# Kernel 1: fused conv head + input_fc.
#   Conv2d(Cin->C1,k) -> ReLU -> Conv2d(C1->C2,k) -> flatten -> Linear(F -> I)
# Layout: samples on the lane axis (tile_n = 128 per grid step), flat spatial
# index (stride W) on the sublane axis.  Conv weights/biases live in SMEM and
# are read as scalars in fully unrolled tap loops; the FC runs on the MXU
# using a host-padded weight so no in-kernel reshape is ever needed.
# ---------------------------------------------------------------------------
def make_conv_fc_head(tile_n, Cin, C1, C2, k, W, L0, L1, L2, I):
    def kernel(x_ref, w1_ref, b1_ref, w2_ref, b2_ref, wfc_ref, bfc_ref,
               o_ref, h1_scr):
        # Conv1 + ReLU   (lane-dense (L1, tile_n) accumulators)
        for co in range(C1):
            acc = jnp.zeros((L1, tile_n), jnp.float32)
            for ci in range(Cin):
                for kh in range(k):
                    for kw in range(k):
                        off = kh * W + kw
                        wv = w1_ref[((co * Cin + ci) * k + kh) * k + kw]
                        acc = acc + wv * x_ref[ci, off:off + L1, :]
            h1_scr[co] = jnp.maximum(acc + b1_ref[co], 0.0)

        # Conv2 + fused input_fc (per-channel MXU matmul accumulation)
        out = jnp.zeros((I, tile_n), jnp.float32) + bfc_ref[...]
        for co in range(C2):
            acc = jnp.zeros((L2, tile_n), jnp.float32)
            for ci in range(C1):
                for kh in range(k):
                    for kw in range(k):
                        off = kh * W + kw
                        wv = w2_ref[((co * C1 + ci) * k + kh) * k + kw]
                        acc = acc + wv * h1_scr[ci, off:off + L2, :]
            out = out + jnp.dot(wfc_ref[co], acc + b2_ref[co],
                                preferred_element_type=jnp.float32)
        o_ref[...] = out

    def run(x_lanes, w1_flat, b1, w2_flat, b2, wfc_pad, bfc_col):
        n_pad = x_lanes.shape[-1]
        return pl.pallas_call(
            kernel,
            out_shape=jax.ShapeDtypeStruct((I, n_pad), jnp.float32),
            grid=(n_pad // tile_n,),
            in_specs=[
                pl.BlockSpec((Cin, L0, tile_n), lambda n: (0, 0, n)),
                pl.BlockSpec(memory_space=pltpu.MemorySpace.SMEM),
                pl.BlockSpec(memory_space=pltpu.MemorySpace.SMEM),
                pl.BlockSpec(memory_space=pltpu.MemorySpace.SMEM),
                pl.BlockSpec(memory_space=pltpu.MemorySpace.SMEM),
                pl.BlockSpec((C2, I, L2), lambda n: (0, 0, 0)),
                pl.BlockSpec((I, 1), lambda n: (0, 0)),
            ],
            out_specs=pl.BlockSpec((I, tile_n), lambda n: (0, n)),
            scratch_shapes=[pltpu.VMEM((C1, L1, tile_n), jnp.float32)],
            compiler_params=pltpu.CompilerParams(
                dimension_semantics=("parallel",)),
        )(x_lanes, w1_flat, b1, w2_flat, b2, wfc_pad, bfc_col)

    return run


# ---------------------------------------------------------------------------
# Kernel 2: single-block Linear + tanh (init_net).
# ---------------------------------------------------------------------------
def _linear_tanh_kernel(x_ref, w_ref, b_ref, o_ref):
    o_ref[...] = jnp.tanh(
        jnp.dot(x_ref[...], w_ref[...], preferred_element_type=jnp.float32)
        + b_ref[...])


def linear_tanh(x, w, b):
    return pl.pallas_call(
        _linear_tanh_kernel,
        out_shape=jax.ShapeDtypeStruct((x.shape[0], w.shape[1]), jnp.float32),
    )(x, w, b)


# ---------------------------------------------------------------------------
# Kernel 3: one full LSTM layer in a single kernel invocation.
#   - per-gate x @ W_ih projections hoisted out of the recurrence.
#   - time recurrence as an in-kernel fori_loop with (h, c) value carries,
#     aligned dynamic-slice access into the per-step buffers (Bp % 8 == 0).
#   - final h/c stored once; optional fused out_net projection in epilogue.
# Gate order (i, f, g, o); bias = b_ih + b_hh merged.  All shapes 2-D.
# ---------------------------------------------------------------------------
def make_lstm_layer(S, Bp, I, Hd, Dout=None):
    project = Dout is not None
    G = 4

    def kernel(x_ref, wih_ref, whh_ref, b_ref, h0_ref, c0_ref, *rest):
        if project:
            (wout_ref, bout_ref, y_ref, hn_ref, cn_ref, gx_scr, ys_scr) = rest
        else:
            (y_ref, hn_ref, cn_ref, gx_scr) = rest
            ys_scr = y_ref

        # Hoisted input projection: 4 per-gate (S*Bp, I) @ (I, Hd) matmuls
        # for the whole sequence (no per-timestep matmul on x).
        x = x_ref[...]
        for g in range(G):
            gx_scr[g] = (jnp.dot(x, wih_ref[g],
                                 preferred_element_type=jnp.float32)
                         + b_ref[g])

        w_i = whh_ref[0]
        w_f = whh_ref[1]
        w_g = whh_ref[2]
        w_o = whh_ref[3]

        def step(t, carry):
            h, c = carry
            row = pl.multiple_of(t * Bp, 8)
            i_g = jax.nn.sigmoid(
                gx_scr[0, pl.ds(row, Bp), :]
                + jnp.dot(h, w_i, preferred_element_type=jnp.float32))
            f_g = jax.nn.sigmoid(
                gx_scr[1, pl.ds(row, Bp), :]
                + jnp.dot(h, w_f, preferred_element_type=jnp.float32))
            g_g = jnp.tanh(
                gx_scr[2, pl.ds(row, Bp), :]
                + jnp.dot(h, w_g, preferred_element_type=jnp.float32))
            o_g = jax.nn.sigmoid(
                gx_scr[3, pl.ds(row, Bp), :]
                + jnp.dot(h, w_o, preferred_element_type=jnp.float32))
            c_new = f_g * c + i_g * g_g
            h_new = o_g * jnp.tanh(c_new)
            ys_scr[pl.ds(row, Bp), :] = h_new
            return (h_new, c_new)

        h, c = jax.lax.fori_loop(0, S, step, (h0_ref[...], c0_ref[...]))
        hn_ref[...] = h                    # written once, after the recurrence
        cn_ref[...] = c
        if project:
            # Fused out_net: one (S*Bp, Hd) @ (Hd, Dout) lane-dense matmul.
            y_ref[...] = (jnp.dot(ys_scr[...], wout_ref[...],
                                  preferred_element_type=jnp.float32)
                          + bout_ref[...])

    def run(x, wih, whh, b, h0, c0, wout=None, bout=None):
        y_dim = Dout if project else Hd
        out_shape = (jax.ShapeDtypeStruct((S * Bp, y_dim), jnp.float32),
                     jax.ShapeDtypeStruct((Bp, Hd), jnp.float32),
                     jax.ShapeDtypeStruct((Bp, Hd), jnp.float32))
        scratch = [pltpu.VMEM((G, S * Bp, Hd), jnp.float32)]
        args = [x, wih, whh, b, h0, c0]
        if project:
            scratch.append(pltpu.VMEM((S * Bp, Hd), jnp.float32))
            args += [wout, bout]
        return pl.pallas_call(kernel, out_shape=out_shape,
                              scratch_shapes=scratch)(*args)

    return run


# ---------------------------------------------------------------------------
# Model: deterministic parameter construction + forward glue.
# ---------------------------------------------------------------------------
class StepSequenceModelConv2DPallas:
    def __init__(self, init_dim, in_width, in_height, input_size,
                 hidden_dim, n_layers, ksize, key):
        self.init_dim = init_dim
        self.in_width, self.in_height = in_width, in_height
        self.input_size = input_size
        self.hidden_dim = hidden_dim
        self.n_layers = n_layers
        self.ksize = ksize
        self.output_size = in_width * in_height
        self.c_in, self.c1, self.c2 = 2, 3, 3              # num_layers2 = 3

        k = ksize
        W, H = in_width, in_height
        oh1, ow1 = H - k + 1, W - k + 1
        oh2, ow2 = oh1 - k + 1, ow1 - k + 1
        self.oh2, self.ow2 = oh2, ow2
        self.linear_layer_input_size = oh2 * ow2 * self.c2
        # Flat "stride-W" buffer lengths for the conv kernel.
        self.L2 = oh2 * W
        self.L1 = _round_up((k - 1) * (W + 1) + self.L2, 8)
        self.L0 = _round_up((k - 1) * (W + 1) + self.L1, 8)

        def nrm(kk, shape, scale=0.1):
            return scale * jax.random.normal(kk, shape, jnp.float32)

        keys = iter(jax.random.split(key, 12 + 3 * n_layers))
        # init_net
        self.w_init = nrm(next(keys), (init_dim, hidden_dim))
        self.b_init = nrm(next(keys), (1, hidden_dim))
        # conv head (PyTorch layout (Cout, Cin, k, k); flattened for SMEM)
        self.w_conv1 = nrm(next(keys), (self.c1, self.c_in, k, k))
        self.b_conv1 = nrm(next(keys), (self.c1,))
        self.w_conv2 = nrm(next(keys), (self.c2, self.c1, k, k))
        self.b_conv2 = nrm(next(keys), (self.c2,))
        self.w_conv1_flat = self.w_conv1.reshape(-1)
        self.w_conv2_flat = self.w_conv2.reshape(-1)
        # input_fc, stored (F, I) with PyTorch flatten order (c, i, j)
        self.w_fc = nrm(next(keys), (self.linear_layer_input_size, input_size))
        self.b_fc = nrm(next(keys), (input_size,))
        self.b_fc_col = self.b_fc.reshape(input_size, 1)
        # host-side scatter of the FC weight into the padded flat layout:
        # wfc_pad[c, :, i*W + j] = w_fc[(c*oh2 + i)*ow2 + j, :]; zero elsewhere.
        wfc4 = self.w_fc.reshape(self.c2, oh2, ow2, input_size)
        wfc4 = jnp.transpose(wfc4, (0, 3, 1, 2))            # (C2, I, oh2, ow2)
        wfc4 = jnp.pad(wfc4, ((0, 0), (0, 0), (0, 0), (0, W - ow2)))
        self.wfc_pad = wfc4.reshape(self.c2, input_size, self.L2)
        # LSTM (per-gate stacking, order i,f,g,o; bias = b_ih + b_hh merged)
        self.w_ih, self.w_hh, self.b_lstm = [], [], []
        for layer in range(n_layers):
            d_in = input_size if layer == 0 else hidden_dim
            self.w_ih.append(nrm(next(keys), (4, d_in, hidden_dim)))
            self.w_hh.append(nrm(next(keys), (4, hidden_dim, hidden_dim)))
            self.b_lstm.append(nrm(next(keys), (4, 1, hidden_dim)))
        # out_net
        self.w_out = nrm(next(keys), (hidden_dim, self.output_size))
        self.b_out = nrm(next(keys), (1, self.output_size))

    def __call__(self, x, init):
        # x: (B, S, 2, H, W) float32 ; init: (1, B, init_dim) float32
        B, S = x.shape[0], x.shape[1]
        H, W = x.shape[3], x.shape[4]
        N = B * S
        Bp = _round_up(B, 8)                     # sublane-aligned batch

        # init_net -> h0 == c0 (same weights applied to the same input)
        init_b = jnp.pad(init.reshape(B, self.init_dim).astype(jnp.float32),
                         ((0, Bp - B), (0, 0)))
        h0 = linear_tanh(init_b, self.w_init, self.b_init)          # (Bp, Hd)

        # fused conv head + input_fc; samples mapped onto the lane axis
        tile_n = 128
        n_pad = _round_up(N, tile_n)
        x_flat = x.reshape(N, self.c_in, H * W).astype(jnp.float32)
        x_flat = jnp.pad(x_flat, ((0, n_pad - N), (0, 0),
                                  (0, self.L0 - H * W)))
        x_lanes = jnp.transpose(x_flat, (1, 2, 0))           # (Cin, L0, n_pad)
        conv_head = make_conv_fc_head(tile_n, self.c_in, self.c1, self.c2,
                                      self.ksize, W, self.L0, self.L1,
                                      self.L2, self.input_size)
        rnn_in_t = conv_head(x_lanes, self.w_conv1_flat, self.b_conv1,
                             self.w_conv2_flat, self.b_conv2,
                             self.wfc_pad, self.b_fc_col)     # (I, n_pad)
        rnn_in = rnn_in_t[:, :N].T                            # (N, I), n=b*S+s
        seq = rnn_in.reshape(B, S, self.input_size).transpose(1, 0, 2)
        seq = jnp.pad(seq, ((0, 0), (0, Bp - B), (0, 0)))     # (S, Bp, I)
        layer_in = seq.reshape(S * Bp, self.input_size)

        # stacked LSTM; out_net fused into the last layer's epilogue
        hn_list, cn_list = [], []
        for layer in range(self.n_layers):
            d_in = self.input_size if layer == 0 else self.hidden_dim
            last = (layer == self.n_layers - 1)
            lstm = make_lstm_layer(S, Bp, d_in, self.hidden_dim,
                                   Dout=self.output_size if last else None)
            if last:
                layer_in, hn, cn = lstm(layer_in, self.w_ih[layer],
                                        self.w_hh[layer], self.b_lstm[layer],
                                        h0, h0, self.w_out, self.b_out)
            else:
                layer_in, hn, cn = lstm(layer_in, self.w_ih[layer],
                                        self.w_hh[layer], self.b_lstm[layer],
                                        h0, h0)
            hn_list.append(hn[:B])
            cn_list.append(cn[:B])

        out = layer_in.reshape(S, Bp, self.output_size)[:, :B]
        out = out.transpose(1, 0, 2)                          # (B, S, out)
        h_n = jnp.stack(hn_list)                              # (L, B, Hd)
        c_n = jnp.stack(cn_list)
        return out, (h_n, c_n)


if __name__ == "__main__":
    # Small deterministic example.
    init_dim, in_width, in_height = 8, 16, 16
    input_size, hidden_dim, n_layers, ksize = 32, 32, 2, 3
    B, S = 2, 4

    key = jax.random.PRNGKey(0)
    k_model, k_x, k_init = jax.random.split(key, 3)

    model = StepSequenceModelConv2DPallas(init_dim, in_width, in_height,
                                          input_size, hidden_dim, n_layers,
                                          ksize, k_model)

    x = jax.random.normal(k_x, (B, S, 2, in_height, in_width), jnp.float32)
    init = jax.random.normal(k_init, (1, B, init_dim), jnp.float32)

    out, (h_n, c_n) = model(x, init)
    jax.block_until_ready((out, h_n, c_n))

    assert out.shape == (B, S, in_width * in_height)
    assert h_n.shape == (n_layers, B, hidden_dim)
    assert c_n.shape == (n_layers, B, hidden_dim)
    assert bool(jnp.all(jnp.isfinite(out)))
    assert bool(jnp.all(jnp.isfinite(h_n))) and bool(jnp.all(jnp.isfinite(c_n)))
    print("KERNEL_OK")
</pallas_src>

<mosaic_0001>
module attributes {stable_mosaic.version = 11 : i64} {
  func.func @_linear_tanh_kernel(%arg0: memref<8x8xf32, #tpu.memory_space<vmem>>, %arg1: memref<8x32xf32, #tpu.memory_space<vmem>>, %arg2: memref<1x32xf32, #tpu.memory_space<vmem>>, %arg3: memref<8x32xf32, #tpu.memory_space<vmem>>) attributes {dimension_semantics = [], scalar_prefetch = 0 : i64, scratch_operands = 0 : i64, tpu.core_type = #tpu.core_type<tc>} {
    %c0 = arith.constant 0 : index
    %c0_0 = arith.constant 0 : index
    %0 = vector.load %arg0[%c0, %c0_0] : memref<8x8xf32, #tpu.memory_space<vmem>>, vector<8x8xf32>
    %c0_1 = arith.constant 0 : index
    %c0_2 = arith.constant 0 : index
    %1 = vector.load %arg1[%c0_1, %c0_2] : memref<8x32xf32, #tpu.memory_space<vmem>>, vector<8x32xf32>
    %cst = arith.constant dense<0.000000e+00> : vector<8x32xf32>
    %2 = tpu.matmul %0, %1, %cst {dimension_numbers = #tpu.dot_dimension_numbers<[1], [0], [0], [1], [0, 0, 1, 1], [], []>} : vector<8x8xf32>, vector<8x32xf32>, vector<8x32xf32> -> vector<8x32xf32>
    %c0_3 = arith.constant 0 : index
    %c0_4 = arith.constant 0 : index
    %3 = vector.load %arg2[%c0_3, %c0_4] : memref<1x32xf32, #tpu.memory_space<vmem>>, vector<1x32xf32>
    %4 = vector.broadcast %3 : vector<1x32xf32> to vector<8x32xf32>
    %5 = arith.addf %2, %4 : vector<8x32xf32>
    %6 = math.tanh %5 : vector<8x32xf32>
    %c0_5 = arith.constant 0 : index
    %c0_6 = arith.constant 0 : index
    %7 = vector.load %arg3[%c0_5, %c0_6] : memref<8x32xf32, #tpu.memory_space<vmem>>, vector<8x32xf32>
    tpu.vector_store %arg3[%c0_5, %c0_6], %6 {strides = array<i32>} : memref<8x32xf32, #tpu.memory_space<vmem>>, vector<8x32xf32>,
    return
  }
}

</mosaic_0001>

<llo_original>
// kernel: tpu_custom_call.1
$region0: #{tpu_custom_call.1}
  #allocation0 [shape = 'u32[]', space=smem, size = 0x4, offset = 0x4, fixed_abs, tag = 'smem constant byte address 0x4 - core index']
  #allocation1 [shape = 'u32[144,128]{1,0:T(1,128)}', space=vmem, size = 0x12000, scoped, tag = 'internal scratch']
  %s0 = inlined_call_operand.hbm [shape: f32[8,8], index: 0, kind: input, shape index: {}]
  %s1 = inlined_call_operand.hbm [shape: f32[8,32], index: 1, kind: input, shape index: {}]
  %s2 = inlined_call_operand.vmem [shape: f32[1,32], index: 2, kind: input, shape index: {}]
  %s3 = inlined_call_operand.hbm [shape: f32[8,32], index: 3, kind: output, shape index: {}]
  %s4 = sld [smem:[#allocation0]]
  $region30: #{tpu_custom_call.1} parent=0
    _
  %s6 = ssub.s32 1, %s4
  %s7 = scalar_select 0, %s6, %s4
  $region1: #{tpu_custom_call.1} parent=0
    #allocation2 [shape = 'u8[4096]{0}', space=vmem, size = 0x1000, scoped, tag = 'input window, operand 0, single buffered']
    #allocation3 [shape = 's32[1]{0}', space=sflag, size = 0x4, scoped, tag = 'scoped memory for tpu_custom_call.1']
    #allocation4 [shape = 's32[1]{0}', space=sflag, size = 0x4, scoped, tag = 'scoped memory for tpu_custom_call.1']
    #allocation5 [shape = 'u8[4096]{0}', space=vmem, size = 0x1000, scoped, tag = 'input window, operand 1, single buffered']
    #allocation6 [shape = 's32[1]{0}', space=sflag, size = 0x4, scoped, tag = 'scoped memory for tpu_custom_call.1']
    #allocation7 [shape = 'u8[4096]{0}', space=vmem, size = 0x1000, scoped, tag = 'output window, operand 0, single buffered']
    %8 = vsyncpa [#allocation3], 0
    %9 = vsyncpa [#allocation6], 0
    %10 = vsyncpa [#allocation4], 0
    // Predicated region
    $region2: #{tpu_custom_call.1} parent=1 // pred_check
      _
    $region3: #{tpu_custom_call.1} parent=1 // pred_check_branch
      %12 = sbr.rel (0) target = $region5
    $region4: #{tpu_custom_call.1} parent=1 // pred_region
      %s14 = ssub.s32 128, 128
      %15 = vsyncadd [#allocation3], %s14
      %s17 = sshll.u32 [#allocation2], 4
      %s18 = int_to_ptr.vmem [resolvable:$true] %s17
      %20 = dma.hbm_to_vmem [thread:$0]  %s0, 128, %s18, [#allocation3]
    $region5: #{tpu_custom_call.1} parent=1 // pred_fallthru
      _
    // Predicated region
    $region6: #{tpu_custom_call.1} parent=1 // pred_check
      _
    $region7: #{tpu_custom_call.1} parent=1 // pred_check_branch
      %22 = sbr.rel (0) target = $region9
    $region8: #{tpu_custom_call.1} parent=1 // pred_region
      %s24 = ssub.s32 128, 128
      %25 = vsyncadd [#allocation6], %s24
      %s27 = sshll.u32 [#allocation5], 4
      %s28 = int_to_ptr.vmem [resolvable:$true] %s27
      %30 = dma.hbm_to_vmem [thread:$0]  %s1, 128, %s28, [#allocation6]
    $region9: #{tpu_custom_call.1} parent=1 // pred_fallthru
      _
    // Predicated region
    $region10: #{tpu_custom_call.1} parent=1 // pred_check
      _
    $region11: #{tpu_custom_call.1} parent=1 // pred_check_branch
      %32 = sbr.rel (0) target = $region13
    $region12: #{tpu_custom_call.1} parent=1 // pred_region
      _
    $region13: #{tpu_custom_call.1} parent=1 // pred_fallthru
      _
    // Predicated region
    $region14: #{tpu_custom_call.1} parent=1 // pred_check
      _
    $region15: #{tpu_custom_call.1} parent=1 // pred_check_branch
      %34 = sbr.rel (0) target = $region17
    $region16: #{tpu_custom_call.1} parent=1 // pred_region
      %35 = dma.done [#allocation3], 128
    $region17: #{tpu_custom_call.1} parent=1 // pred_fallthru
      _
    // Predicated region
    $region18: #{tpu_custom_call.1} parent=1 // pred_check
      _
    $region19: #{tpu_custom_call.1} parent=1 // pred_check_branch
      %37 = sbr.rel (0) target = $region21
    $region20: #{tpu_custom_call.1} parent=1 // pred_region
      %38 = dma.done [#allocation6], 128
    $region21: #{tpu_custom_call.1} parent=1 // pred_fallthru
      _
    %v39 = vld [vmem:[#allocation2] sm:$0xff]
    %v40 = vld [vmem:[#allocation5] sm:$0xff]
    %v41 = vld [vmem:[%s2] sm:$0x1]
    %v43 = vlaneseq
    %v44 = vshrl.u32 %v43, 7
    %v45 = vsub.s32 0, %v44
    %v46 = vrot.slane %v41, %v45
    %vm48 = vcmask 64512
    %v50 = vsel %vm48, %v39, 0
    %52 = vmatprep.subr.mxu0 0.0
    %53 = vmatpush1.msra.mxu0 %v40
    %54 = vmatprep.subr.mxu0 0.0
    %55 = vmatpush1.msra.mxu0 0.0
    %56 = vmatprep.subr.mxu0 0.0
    %57 = vmatpush1.msra.mxu0 0.0
    %58 = vmatprep.subr.mxu0 0.0
    %59 = vmatpush1.msra.mxu0 0.0
    %60 = vmatprep.subr.mxu0 0.0
    %61 = vmatpush1.msra.mxu0 0.0
    %62 = vmatprep.subr.mxu0 0.0
    %63 = vmatpush1.msra.mxu0 0.0
    %64 = vmatprep.subr.mxu0 0.0
    %65 = vmatpush1.msra.mxu0 0.0
    %66 = vmatprep.subr.mxu0 0.0
    %67 = vmatpush1.msra.mxu0 0.0
    %68 = vmatprep.subr.mxu0 0.0
    %69 = vmatpush1.msra.mxu0 0.0
    %70 = vmatprep.subr.mxu0 0.0
    %71 = vmatpush1.msra.mxu0 0.0
    %72 = vmatprep.subr.mxu0 0.0
    %73 = vmatpush1.msra.mxu0 0.0
    %74 = vmatprep.subr.mxu0 0.0
    %75 = vmatpush1.msra.mxu0 0.0
    %76 = vmatprep.subr.mxu0 0.0
    %77 = vmatpush1.msra.mxu0 0.0
    %78 = vmatprep.subr.mxu0 0.0
    %79 = vmatpush1.msra.mxu0 0.0
    %80 = vmatprep.subr.mxu0 0.0
    %81 = vmatpush1.msra.mxu0 0.0
    %82 = vmatprep.subr.mxu0 0.0
    %83 = vmatpush1.msra.mxu0 0.0
    %84 = vmatprep.subr.mxu0 0.0
    %85 = vmatpush1.msra.mxu0 0.0
    %86 = vmatprep.subr.mxu0 0.0
    %87 = vmatpush1.msra.mxu0 0.0
    %88 = vmatprep.subr.mxu0 0.0
    %89 = vmatpush1.msra.mxu0 0.0
    %90 = vmatprep.subr.mxu0 0.0
    %91 = vmatpush1.msra.mxu0 0.0
    %92 = vmatprep.subr.mxu0 0.0
    %93 = vmatpush1.msra.mxu0 0.0
    %94 = vmatprep.subr.mxu0 0.0
    %95 = vmatpush1.msra.mxu0 0.0
    %96 = vmatprep.subr.mxu0 0.0
    %97 = vmatpush1.msra.mxu0 0.0
    %98 = vmatprep.subr.mxu0 0.0
    %99 = vmatpush1.msra.mxu0 0.0
    %100 = vmatprep.subr.mxu0 0.0
    %101 = vmatpush1.msra.mxu0 0.0
    %102 = vmatprep.subr.mxu0 0.0
    %103 = vmatpush1.msra.mxu0 0.0
    %104 = vmatprep.subr.mxu0 0.0
    %105 = vmatpush1.msra.mxu0 0.0
    %106 = vmatprep.subr.mxu0 0.0
    %107 = vmatpush1.msra.mxu0 0.0
    %108 = vmatprep.subr.mxu0 0.0
    %109 = vmatpush1.msra.mxu0 0.0
    %110 = vmatprep.subr.mxu0 0.0
    %111 = vmatpush1.msra.mxu0 0.0
    %112 = vmatprep.subr.mxu0 0.0
    %113 = vmatpush1.msra.mxu0 0.0
    %114 = vmatprep.subr.mxu0 0.0
    %115 = vmatpush1.msra.mxu0 0.0
    %116 = vmatprep.mubr.f32.mxu0 0.0
    %117 = vmatmul.mubr.f32.gmra.mrb[0].mxu0 %v50
    %v118 = vpop.f32.mrb[0].mxu0
    %v119 = vadd.f32 %v46, %v118
    %v120 = vpop.f32.mrb[0].mxu0
    %121 = vdwg.mxu0
    %v122 = vtanh.pop %v119
    %vm123 = vcmask 261120
    %124 = vst.msk [vmem:[#allocation7] sm:$0xff] %vm123, %v122
    // Predicated region
    $region22: #{tpu_custom_call.1} parent=1 // pred_check
      _
    $region23: #{tpu_custom_call.1} parent=1 // pred_check_branch
      %126 = sbr.rel (0) target = $region25
    $region24: #{tpu_custom_call.1} parent=1 // pred_region
      %s128 = ssub.s32 128, 128
      %129 = vsyncadd [#allocation4], %s128
      %s131 = sshll.u32 [#allocation7], 4
      %s132 = int_to_ptr.vmem [resolvable:$true] %s131
      %134 = dma.vmem_to_hbm [thread:$0]  %s132, 128, %s3, [#allocation4]
    $region25: #{tpu_custom_call.1} parent=1 // pred_fallthru
      _
    // Predicated region
    $region26: #{tpu_custom_call.1} parent=1 // pred_check
      _
    $region27: #{tpu_custom_call.1} parent=1 // pred_check_branch
      %136 = sbr.rel (0) target = $region29
    $region28: #{tpu_custom_call.1} parent=1 // pred_region
      %137 = dma.done [#allocation4], 128
    $region29: #{tpu_custom_call.1} parent=1 // pred_fallthru
      _
    %138 = vsyncpa [#allocation3], 1
    %139 = vsyncpa [#allocation6], 1
    %140 = vsyncpa [#allocation4], 1

</llo_original>
